<compile_context>
chip_gen: v5e
topology: v5e:2x2
jax: 0.10.0
libtpu: 0.0.40
codegen_flags: <defaults>
</compile_context>

<pallas_src>
import jax
import jax.numpy as jnp
from jax.experimental import pallas as pl
from jax.experimental.pallas import tpu as pltpu


def rnn_classifier_seq_kernel(
    # inputs
    x_ref, h0_ref,
    wemb_ref, bemb_ref,          # embedding   : F      -> H
    wrx_ref, wrh_ref, br_ref,    # fused RNN2  : H -> 2H (x-part / h-part), bias [1, 2H]
    wmap_ref, bmap_ref,          # map_readout : H      -> M
    wnum_ref, bnum_ref,          # num_readout : M      -> O
    # outputs
    num_ref, map_ref, hout_ref,
    # scratch
    h_scratch,
):
    t = pl.program_id(0)

    @pl.when(t == 0)
    def _():
        h_scratch[...] = h0_ref[...]

    H = h_scratch.shape[1]
    mxu_dtype = wemb_ref.dtype   # bf16 (or f32); activations cast only at dots

    x = x_ref[...]               # [B, F] f32
    h = h_scratch[...]           # [B, H] f32

    # embedding + nn.LeakyReLU(0.1)
    emb = (jnp.dot(x.astype(mxu_dtype), wemb_ref[...],
                   preferred_element_type=jnp.float32) + bemb_ref[...])
    x_emb = jnp.where(emb > 0, emb, 0.1 * emb)

    # RNN2 step (act=None):  [h_new | rnn_out] = x_emb @ Wrx + h @ Wrh + br
    hr = (jnp.dot(x_emb.astype(mxu_dtype), wrx_ref[...],
                  preferred_element_type=jnp.float32)
          + jnp.dot(h.astype(mxu_dtype), wrh_ref[...],
                    preferred_element_type=jnp.float32)
          + br_ref[...])
    h_new = hr[:, :H]
    rnn_out = hr[:, H:]

    # dropout p=0 (eval) -> identity
    map_pre = (jnp.dot(rnn_out.astype(mxu_dtype), wmap_ref[...],
                       preferred_element_type=jnp.float32) + bmap_ref[...])
    sig = jax.nn.sigmoid(map_pre)          # detach=False -> use sig directly

    # par=False -> penult = sig
    num = (jnp.dot(sig.astype(mxu_dtype), wnum_ref[...],
                   preferred_element_type=jnp.float32) + bnum_ref[...])

    num_ref[...] = num
    map_ref[...] = map_pre                 # torch returns the pre-sigmoid map
    h_scratch[...] = h_new                 # carry hidden to next grid step

    @pl.when(t == pl.num_programs(0) - 1)
    def _():
        hout_ref[...] = h_new


def init_params(key, input_size, hidden_size, map_size, output_size):
    """Torch-style U(-1/sqrt(fan_in), 1/sqrt(fan_in)) init, [in, out] layout."""
    H, M, O = hidden_size, map_size, output_size
    dims = [
        ("emb", input_size, H),
        ("i2h", 2 * H, H),
        ("i2o", 2 * H, H),
        ("map", H, M),
        ("num", M, O),
    ]
    params = {}
    keys = jax.random.split(key, 2 * len(dims))
    for i, (name, fin, fout) in enumerate(dims):
        bound = 1.0 / jnp.sqrt(jnp.float32(fin))
        w = jax.random.uniform(keys[2 * i], (fin, fout), jnp.float32, -bound, bound)
        b = jax.random.uniform(keys[2 * i + 1], (1, fout), jnp.float32, -bound, bound)
        params[name] = (w, b)
    return params


def prepare_params(raw, hidden_size, w_dtype=jnp.bfloat16):
    """Fuse RNN2 weights (K-split + N-stack) and cast weights to the MXU dtype.

    Biases stay float32 (added post-matmul on the VPU)."""
    H = hidden_size
    wemb, bemb = raw["emb"]
    wi2h, bi2h = raw["i2h"]
    wi2o, bi2o = raw["i2o"]
    wmap, bmap = raw["map"]
    wnum, bnum = raw["num"]

    wrx = jnp.concatenate([wi2h[:H], wi2o[:H]], axis=1)   # [H, 2H] : x-part
    wrh = jnp.concatenate([wi2h[H:], wi2o[H:]], axis=1)   # [H, 2H] : h-part
    br = jnp.concatenate([bi2h, bi2o], axis=1)            # [1, 2H]

    cast = lambda w: w.astype(w_dtype)
    f32 = lambda b: b.astype(jnp.float32)
    return (cast(wemb), f32(bemb),
            cast(wrx), cast(wrh), f32(br),
            cast(wmap), f32(bmap),
            cast(wnum), f32(bnum))


def _resident2d(a):
    # Whole-array block, constant index map -> stays VMEM-resident across grid.
    return pl.BlockSpec(a.shape, lambda t: (0, 0))


@jax.jit
def rnn_classifier_forward_seq(x_seq, hidden0, prepared):
    """Run T timesteps of RNNClassifier.forward in one pallas_call.

    Returns (num_seq [T,B,O], map_seq [T,B,M] (pre-sigmoid), hidden_final [B,H]).
    """
    T, B, F = x_seq.shape
    H = hidden0.shape[1]
    wemb, bemb, wrx, wrh, br, wmap, bmap, wnum, bnum = prepared
    M = wmap.shape[1]
    O = wnum.shape[1]

    in_specs = [
        pl.BlockSpec((None, B, F), lambda t: (t, 0, 0)),   # x per timestep
        _resident2d(hidden0),                              # h0 (read at t==0)
        _resident2d(wemb), _resident2d(bemb),
        _resident2d(wrx), _resident2d(wrh), _resident2d(br),
        _resident2d(wmap), _resident2d(bmap),
        _resident2d(wnum), _resident2d(bnum),
    ]
    out_specs = (
        pl.BlockSpec((None, B, O), lambda t: (t, 0, 0)),   # num per step
        pl.BlockSpec((None, B, M), lambda t: (t, 0, 0)),   # map per step
        pl.BlockSpec((B, H), lambda t: (0, 0)),            # final hidden
    )
    out_shapes = (
        jax.ShapeDtypeStruct((T, B, O), jnp.float32),
        jax.ShapeDtypeStruct((T, B, M), jnp.float32),
        jax.ShapeDtypeStruct((B, H), jnp.float32),
    )

    num_seq, map_seq, h_final = pl.pallas_call(
        rnn_classifier_seq_kernel,
        out_shape=out_shapes,
        grid_spec=pltpu.PrefetchScalarGridSpec(
            num_scalar_prefetch=0,
            grid=(T,),
            in_specs=in_specs,
            out_specs=out_specs,
            scratch_shapes=[pltpu.VMEM((B, H), jnp.float32)],  # hidden carry
        ),
        compiler_params=pltpu.CompilerParams(
            dimension_semantics=("arbitrary",)),               # sequential recurrence
    )(x_seq, hidden0, wemb, bemb, wrx, wrh, br, wmap, bmap, wnum, bnum)
    return num_seq, map_seq, h_final


def rnn_classifier_forward(x, hidden, prepared):
    """Single-step API matching RNNClassifier.forward(x, hidden).

    Returns (num, shape, map, hidden) like the torch module."""
    num_seq, map_seq, h_new = rnn_classifier_forward_seq(x[None], hidden, prepared)
    shape = jnp.zeros((10,), jnp.float32)   # self.mock_shape_pred (constant zeros)
    return num_seq[0], shape, map_seq[0], h_new


def _reference_forward_seq(x_seq, hidden, raw_params, w_dtype):
    """Pure-JAX reference: original (unfused, concat-based) formulation,
    mirroring the bf16 cast at the dot inputs."""
    def lin(name, v):
        w, b = raw_params[name]
        return (jnp.dot(v.astype(w_dtype), w.astype(w_dtype),
                        preferred_element_type=jnp.float32) + b)

    nums, maps = [], []
    h = hidden
    for t in range(x_seq.shape[0]):
        e = lin("emb", x_seq[t])
        x_emb = jnp.where(e > 0, e, 0.1 * e)
        comb = jnp.concatenate([x_emb, h], axis=-1)
        h_new = lin("i2h", comb)                 # RNN2, act=None
        rnn_out = lin("i2o", comb)
        m = lin("map", rnn_out)
        s = jax.nn.sigmoid(m)
        n = lin("num", s)
        nums.append(n)
        maps.append(m)
        h = h_new
    return jnp.stack(nums), jnp.stack(maps), h


if __name__ == "__main__":
    # Small shapes consistent with the module's forward:
    #   x: [batch, input_size], hidden: [batch, hidden_size]
    batch = 4
    input_size = 10
    hidden_size = 32
    map_size = 36
    output_size = 8
    seq_len = 8
    w_dtype = jnp.bfloat16   # MXU-native on v6e/v7x; elementwise math stays f32

    key = jax.random.PRNGKey(0)
    kx, kp = jax.random.split(key, 2)
    x_seq = jax.random.normal(kx, (seq_len, batch, input_size), jnp.float32)
    hidden0 = jnp.zeros((batch, hidden_size), jnp.float32)   # rnn.initHidden

    raw = init_params(kp, input_size, hidden_size, map_size, output_size)
    prepared = prepare_params(raw, hidden_size, w_dtype)

    # Time-fused kernel: one pallas_call for the whole sequence.
    num_seq, map_seq, h_final = rnn_classifier_forward_seq(x_seq, hidden0, prepared)
    jax.block_until_ready((num_seq, map_seq, h_final))

    # Single-step call matching the torch forward signature/return tuple.
    num1, shape1, map1, h1 = rnn_classifier_forward(x_seq[0], hidden0, prepared)
    jax.block_until_ready((num1, shape1, map1, h1))

    # Correctness check vs pure-JAX (concat-based, unfused-weight) reference.
    rnum, rmap, rh = _reference_forward_seq(x_seq, hidden0, raw, w_dtype)
    assert jnp.allclose(num_seq, rnum, atol=1e-3, rtol=1e-3)
    assert jnp.allclose(map_seq, rmap, atol=1e-3, rtol=1e-3)
    assert jnp.allclose(h_final, rh, atol=1e-3, rtol=1e-3)
    assert jnp.allclose(num1, rnum[0], atol=1e-3, rtol=1e-3)
    assert jnp.allclose(map1, rmap[0], atol=1e-3, rtol=1e-3)
    assert shape1.shape == (10,)

    print("KERNEL_OK")
</pallas_src>

<mosaic_0001>
module attributes {stable_mosaic.version = 11 : i64} {
  func.func @rnn_classifier_seq_kernel(%arg0: i32, %arg1: memref<1x4x10xf32, #tpu.memory_space<vmem>>, %arg2: memref<4x32xf32, #tpu.memory_space<vmem>>, %arg3: memref<10x32xbf16, #tpu.memory_space<vmem>>, %arg4: memref<1x32xf32, #tpu.memory_space<vmem>>, %arg5: memref<32x64xbf16, #tpu.memory_space<vmem>>, %arg6: memref<32x64xbf16, #tpu.memory_space<vmem>>, %arg7: memref<1x64xf32, #tpu.memory_space<vmem>>, %arg8: memref<32x36xbf16, #tpu.memory_space<vmem>>, %arg9: memref<1x36xf32, #tpu.memory_space<vmem>>, %arg10: memref<36x8xbf16, #tpu.memory_space<vmem>>, %arg11: memref<1x8xf32, #tpu.memory_space<vmem>>, %arg12: memref<1x4x8xf32, #tpu.memory_space<vmem>>, %arg13: memref<1x4x36xf32, #tpu.memory_space<vmem>>, %arg14: memref<4x32xf32, #tpu.memory_space<vmem>>, %arg15: memref<4x32xf32, #tpu.memory_space<vmem>>) attributes {dimension_semantics = [#tpu.dimension_semantics<arbitrary>], iteration_bounds = array<i64: 8>, scalar_prefetch = 0 : i64, scratch_operands = 1 : i64, tpu.core_type = #tpu.core_type<tc>, window_params = [{transform_indices = @transform_0, window_bounds = array<i64: 1, 4, 10>}, {pipeline_mode = #tpu.pipeline_mode<synchronous>, transform_indices = @transform_1, window_bounds = array<i64: 4, 32>}, {pipeline_mode = #tpu.pipeline_mode<synchronous>, transform_indices = @transform_2, window_bounds = array<i64: 10, 32>}, {pipeline_mode = #tpu.pipeline_mode<synchronous>, transform_indices = @transform_3, window_bounds = array<i64: 1, 32>}, {pipeline_mode = #tpu.pipeline_mode<synchronous>, transform_indices = @transform_4, window_bounds = array<i64: 32, 64>}, {pipeline_mode = #tpu.pipeline_mode<synchronous>, transform_indices = @transform_5, window_bounds = array<i64: 32, 64>}, {pipeline_mode = #tpu.pipeline_mode<synchronous>, transform_indices = @transform_6, window_bounds = array<i64: 1, 64>}, {pipeline_mode = #tpu.pipeline_mode<synchronous>, transform_indices = @transform_7, window_bounds = array<i64: 32, 36>}, {pipeline_mode = #tpu.pipeline_mode<synchronous>, transform_indices = @transform_8, window_bounds = array<i64: 1, 36>}, {pipeline_mode = #tpu.pipeline_mode<synchronous>, transform_indices = @transform_9, window_bounds = array<i64: 36, 8>}, {pipeline_mode = #tpu.pipeline_mode<synchronous>, transform_indices = @transform_10, window_bounds = array<i64: 1, 8>}, {transform_indices = @transform_11, window_bounds = array<i64: 1, 4, 8>}, {transform_indices = @transform_12, window_bounds = array<i64: 1, 4, 36>}, {pipeline_mode = #tpu.pipeline_mode<synchronous>, transform_indices = @transform_13, window_bounds = array<i64: 4, 32>}]} {
    %c0_i32 = arith.constant 0 : i32
    %0 = arith.cmpi eq, %arg0, %c0_i32 : i32
    %1 = arith.extui %0 : i1 to i32
    %c0_i32_0 = arith.constant 0 : i32
    %2 = arith.cmpi ne, %1, %c0_i32_0 : i32
    scf.if %2 {
      %c0_39 = arith.constant 0 : index
      %c0_40 = arith.constant 0 : index
      %56 = vector.load %arg2[%c0_39, %c0_40] : memref<4x32xf32, #tpu.memory_space<vmem>>, vector<4x32xf32>
      %c0_41 = arith.constant 0 : index
      %c0_42 = arith.constant 0 : index
      %57 = vector.load %arg15[%c0_41, %c0_42] : memref<4x32xf32, #tpu.memory_space<vmem>>, vector<4x32xf32>
      tpu.vector_store %arg15[%c0_41, %c0_42], %56 {strides = array<i32>} : memref<4x32xf32, #tpu.memory_space<vmem>>, vector<4x32xf32>,
    } else {
    }
    %c0 = arith.constant 0 : index
    %c0_1 = arith.constant 0 : index
    %c0_2 = arith.constant 0 : index
    %3 = vector.load %arg1[%c0, %c0_1, %c0_2] : memref<1x4x10xf32, #tpu.memory_space<vmem>>, vector<1x4x10xf32>
    %4 = vector.shape_cast %3 : vector<1x4x10xf32> to vector<4x10xf32>
    %c0_3 = arith.constant 0 : index
    %c0_4 = arith.constant 0 : index
    %5 = vector.load %arg15[%c0_3, %c0_4] : memref<4x32xf32, #tpu.memory_space<vmem>>, vector<4x32xf32>
    %6 = arith.truncf %4 : vector<4x10xf32> to vector<4x10xbf16>
    %c0_5 = arith.constant 0 : index
    %c0_6 = arith.constant 0 : index
    %7 = vector.load %arg3[%c0_5, %c0_6] : memref<10x32xbf16, #tpu.memory_space<vmem>>, vector<10x32xbf16>
    %cst = arith.constant dense<0.000000e+00> : vector<4x32xf32>
    %8 = tpu.matmul %6, %7, %cst {dimension_numbers = #tpu.dot_dimension_numbers<[1], [0], [0], [1], [0, 0, 1, 1], [], []>} : vector<4x10xbf16>, vector<10x32xbf16>, vector<4x32xf32> -> vector<4x32xf32>
    %c0_7 = arith.constant 0 : index
    %c0_8 = arith.constant 0 : index
    %9 = vector.load %arg4[%c0_7, %c0_8] : memref<1x32xf32, #tpu.memory_space<vmem>>, vector<1x32xf32>
    %10 = vector.broadcast %9 : vector<1x32xf32> to vector<4x32xf32>
    %11 = arith.addf %8, %10 : vector<4x32xf32>
    %cst_9 = arith.constant 0.000000e+00 : f32
    %12 = vector.broadcast %cst_9 : f32 to vector<4x32xf32>
    %13 = arith.cmpf ogt, %11, %12 : vector<4x32xf32>
    %cst_10 = arith.constant 1.000000e-01 : f32
    %14 = vector.broadcast %cst_10 : f32 to vector<4x32xf32>
    %15 = arith.mulf %14, %11 : vector<4x32xf32>
    %16 = arith.select %13, %11, %15 : vector<4x32xi1>, vector<4x32xf32>
    %17 = arith.truncf %16 : vector<4x32xf32> to vector<4x32xbf16>
    %c0_11 = arith.constant 0 : index
    %c0_12 = arith.constant 0 : index
    %18 = vector.load %arg5[%c0_11, %c0_12] : memref<32x64xbf16, #tpu.memory_space<vmem>>, vector<32x64xbf16>
    %cst_13 = arith.constant dense<0.000000e+00> : vector<4x64xf32>
    %19 = tpu.matmul %17, %18, %cst_13 {dimension_numbers = #tpu.dot_dimension_numbers<[1], [0], [0], [1], [0, 0, 1, 1], [], []>} : vector<4x32xbf16>, vector<32x64xbf16>, vector<4x64xf32> -> vector<4x64xf32>
    %20 = arith.truncf %5 : vector<4x32xf32> to vector<4x32xbf16>
    %c0_14 = arith.constant 0 : index
    %c0_15 = arith.constant 0 : index
    %21 = vector.load %arg6[%c0_14, %c0_15] : memref<32x64xbf16, #tpu.memory_space<vmem>>, vector<32x64xbf16>
    %cst_16 = arith.constant dense<0.000000e+00> : vector<4x64xf32>
    %22 = tpu.matmul %20, %21, %cst_16 {dimension_numbers = #tpu.dot_dimension_numbers<[1], [0], [0], [1], [0, 0, 1, 1], [], []>} : vector<4x32xbf16>, vector<32x64xbf16>, vector<4x64xf32> -> vector<4x64xf32>
    %23 = arith.addf %19, %22 : vector<4x64xf32>
    %c0_17 = arith.constant 0 : index
    %c0_18 = arith.constant 0 : index
    %24 = vector.load %arg7[%c0_17, %c0_18] : memref<1x64xf32, #tpu.memory_space<vmem>>, vector<1x64xf32>
    %25 = vector.broadcast %24 : vector<1x64xf32> to vector<4x64xf32>
    %26 = arith.addf %23, %25 : vector<4x64xf32>
    %27 = vector.extract_strided_slice %26 {offsets = [0, 0], sizes = [4, 32], strides = [1, 1]} : vector<4x64xf32> to vector<4x32xf32>
    %28 = vector.extract_strided_slice %26 {offsets = [0, 32], sizes = [4, 32], strides = [1, 1]} : vector<4x64xf32> to vector<4x32xf32>
    %29 = arith.truncf %28 : vector<4x32xf32> to vector<4x32xbf16>
    %c0_19 = arith.constant 0 : index
    %c0_20 = arith.constant 0 : index
    %30 = vector.load %arg8[%c0_19, %c0_20] : memref<32x36xbf16, #tpu.memory_space<vmem>>, vector<32x36xbf16>
    %cst_21 = arith.constant dense<0.000000e+00> : vector<4x36xf32>
    %31 = tpu.matmul %29, %30, %cst_21 {dimension_numbers = #tpu.dot_dimension_numbers<[1], [0], [0], [1], [0, 0, 1, 1], [], []>} : vector<4x32xbf16>, vector<32x36xbf16>, vector<4x36xf32> -> vector<4x36xf32>
    %c0_22 = arith.constant 0 : index
    %c0_23 = arith.constant 0 : index
    %32 = vector.load %arg9[%c0_22, %c0_23] : memref<1x36xf32, #tpu.memory_space<vmem>>, vector<1x36xf32>
    %33 = vector.broadcast %32 : vector<1x36xf32> to vector<4x36xf32>
    %34 = arith.addf %31, %33 : vector<4x36xf32>
    %35 = arith.negf %34 : vector<4x36xf32>
    %36 = math.exp %35 : vector<4x36xf32>
    %cst_24 = arith.constant 1.000000e+00 : f32
    %37 = vector.broadcast %cst_24 : f32 to vector<4x36xf32>
    %38 = arith.addf %37, %36 : vector<4x36xf32>
    %39 = arith.divf %37, %38 : vector<4x36xf32>
    %40 = arith.truncf %39 : vector<4x36xf32> to vector<4x36xbf16>
    %c0_25 = arith.constant 0 : index
    %c0_26 = arith.constant 0 : index
    %41 = vector.load %arg10[%c0_25, %c0_26] : memref<36x8xbf16, #tpu.memory_space<vmem>>, vector<36x8xbf16>
    %cst_27 = arith.constant dense<0.000000e+00> : vector<4x8xf32>
    %42 = tpu.matmul %40, %41, %cst_27 {dimension_numbers = #tpu.dot_dimension_numbers<[1], [0], [0], [1], [0, 0, 1, 1], [], []>} : vector<4x36xbf16>, vector<36x8xbf16>, vector<4x8xf32> -> vector<4x8xf32>
    %c0_28 = arith.constant 0 : index
    %c0_29 = arith.constant 0 : index
    %43 = vector.load %arg11[%c0_28, %c0_29] : memref<1x8xf32, #tpu.memory_space<vmem>>, vector<1x8xf32>
    %44 = vector.broadcast %43 : vector<1x8xf32> to vector<4x8xf32>
    %45 = arith.addf %42, %44 : vector<4x8xf32>
    %c0_30 = arith.constant 0 : index
    %c0_31 = arith.constant 0 : index
    %c0_32 = arith.constant 0 : index
    %46 = vector.load %arg12[%c0_30, %c0_31, %c0_32] : memref<1x4x8xf32, #tpu.memory_space<vmem>>, vector<1x4x8xf32>
    %47 = vector.shape_cast %46 : vector<1x4x8xf32> to vector<4x8xf32>
    %48 = vector.shape_cast %45 : vector<4x8xf32> to vector<1x4x8xf32>
    tpu.vector_store %arg12[%c0_30, %c0_31, %c0_32], %48 {strides = array<i32>} : memref<1x4x8xf32, #tpu.memory_space<vmem>>, vector<1x4x8xf32>,
    %c0_33 = arith.constant 0 : index
    %c0_34 = arith.constant 0 : index
    %c0_35 = arith.constant 0 : index
    %49 = vector.load %arg13[%c0_33, %c0_34, %c0_35] : memref<1x4x36xf32, #tpu.memory_space<vmem>>, vector<1x4x36xf32>
    %50 = vector.shape_cast %49 : vector<1x4x36xf32> to vector<4x36xf32>
    %51 = vector.shape_cast %34 : vector<4x36xf32> to vector<1x4x36xf32>
    tpu.vector_store %arg13[%c0_33, %c0_34, %c0_35], %51 {strides = array<i32>} : memref<1x4x36xf32, #tpu.memory_space<vmem>>, vector<1x4x36xf32>,
    %c0_36 = arith.constant 0 : index
    %c0_37 = arith.constant 0 : index
    %52 = vector.load %arg15[%c0_36, %c0_37] : memref<4x32xf32, #tpu.memory_space<vmem>>, vector<4x32xf32>
    tpu.vector_store %arg15[%c0_36, %c0_37], %27 {strides = array<i32>} : memref<4x32xf32, #tpu.memory_space<vmem>>, vector<4x32xf32>,
    %c7_i32 = arith.constant 7 : i32
    %53 = arith.cmpi eq, %arg0, %c7_i32 : i32
    %54 = arith.extui %53 : i1 to i32
    %c0_i32_38 = arith.constant 0 : i32
    %55 = arith.cmpi ne, %54, %c0_i32_38 : i32
    scf.if %55 {
      %c0_39 = arith.constant 0 : index
      %c0_40 = arith.constant 0 : index
      %56 = vector.load %arg14[%c0_39, %c0_40] : memref<4x32xf32, #tpu.memory_space<vmem>>, vector<4x32xf32>
      tpu.vector_store %arg14[%c0_39, %c0_40], %27 {strides = array<i32>} : memref<4x32xf32, #tpu.memory_space<vmem>>, vector<4x32xf32>,
    } else {
    }
    return
  }
  func.func @transform_0(%arg0: i32) -> (i32, i32, i32) {
    %c0_i32 = arith.constant 0 : i32
    %c0_i32_0 = arith.constant 0 : i32
    %c0_i32_1 = arith.constant 0 : i32
    return %arg0, %c0_i32, %c0_i32_0 : i32, i32, i32
  }
  func.func @transform_1(%arg0: i32) -> (i32, i32) {
    %c0_i32 = arith.constant 0 : i32
    %c0_i32_0 = arith.constant 0 : i32
    %c0_i32_1 = arith.constant 0 : i32
    return %c0_i32, %c0_i32_0 : i32, i32
  }
  func.func @transform_2(%arg0: i32) -> (i32, i32) {
    %c0_i32 = arith.constant 0 : i32
    %c0_i32_0 = arith.constant 0 : i32
    %c0_i32_1 = arith.constant 0 : i32
    return %c0_i32, %c0_i32_0 : i32, i32
  }
  func.func @transform_3(%arg0: i32) -> (i32, i32) {
    %c0_i32 = arith.constant 0 : i32
    %c0_i32_0 = arith.constant 0 : i32
    %c0_i32_1 = arith.constant 0 : i32
    return %c0_i32, %c0_i32_0 : i32, i32
  }
  func.func @transform_4(%arg0: i32) -> (i32, i32) {
    %c0_i32 = arith.constant 0 : i32
    %c0_i32_0 = arith.constant 0 : i32
    %c0_i32_1 = arith.constant 0 : i32
    return %c0_i32, %c0_i32_0 : i32, i32
  }
  func.func @transform_5(%arg0: i32) -> (i32, i32) {
    %c0_i32 = arith.constant 0 : i32
    %c0_i32_0 = arith.constant 0 : i32
    %c0_i32_1 = arith.constant 0 : i32
    return %c0_i32, %c0_i32_0 : i32, i32
  }
  func.func @transform_6(%arg0: i32) -> (i32, i32) {
    %c0_i32 = arith.constant 0 : i32
    %c0_i32_0 = arith.constant 0 : i32
    %c0_i32_1 = arith.constant 0 : i32
    return %c0_i32, %c0_i32_0 : i32, i32
  }
  func.func @transform_7(%arg0: i32) -> (i32, i32) {
    %c0_i32 = arith.constant 0 : i32
    %c0_i32_0 = arith.constant 0 : i32
    %c0_i32_1 = arith.constant 0 : i32
    return %c0_i32, %c0_i32_0 : i32, i32
  }
  func.func @transform_8(%arg0: i32) -> (i32, i32) {
    %c0_i32 = arith.constant 0 : i32
    %c0_i32_0 = arith.constant 0 : i32
    %c0_i32_1 = arith.constant 0 : i32
    return %c0_i32, %c0_i32_0 : i32, i32
  }
  func.func @transform_9(%arg0: i32) -> (i32, i32) {
    %c0_i32 = arith.constant 0 : i32
    %c0_i32_0 = arith.constant 0 : i32
    %c0_i32_1 = arith.constant 0 : i32
    return %c0_i32, %c0_i32_0 : i32, i32
  }
  func.func @transform_10(%arg0: i32) -> (i32, i32) {
    %c0_i32 = arith.constant 0 : i32
    %c0_i32_0 = arith.constant 0 : i32
    %c0_i32_1 = arith.constant 0 : i32
    return %c0_i32, %c0_i32_0 : i32, i32
  }
  func.func @transform_11(%arg0: i32) -> (i32, i32, i32) {
    %c0_i32 = arith.constant 0 : i32
    %c0_i32_0 = arith.constant 0 : i32
    %c0_i32_1 = arith.constant 0 : i32
    return %arg0, %c0_i32, %c0_i32_0 : i32, i32, i32
  }
  func.func @transform_12(%arg0: i32) -> (i32, i32, i32) {
    %c0_i32 = arith.constant 0 : i32
    %c0_i32_0 = arith.constant 0 : i32
    %c0_i32_1 = arith.constant 0 : i32
    return %arg0, %c0_i32, %c0_i32_0 : i32, i32, i32
  }
  func.func @transform_13(%arg0: i32) -> (i32, i32) {
    %c0_i32 = arith.constant 0 : i32
    %c0_i32_0 = arith.constant 0 : i32
    %c0_i32_1 = arith.constant 0 : i32
    return %c0_i32, %c0_i32_0 : i32, i32
  }
}

</mosaic_0001>

<llo_original>
// kernel: rnn_classifier_forward_seq.1
$region0: #{rnn_classifier_forward_seq.1}
  #allocation0 [shape = 'u32[]', space=smem, size = 0x4, offset = 0x4, fixed_abs, tag = 'smem constant byte address 0x4 - core index']
  #allocation1 [shape = 'u32[72,128]{1,0:T(1,128)}', space=vmem, size = 0x9000, scoped, tag = 'internal scratch']
  #allocation2 [shape = 'f32[4,32]{1,0:T(4,128)}', space=vmem, size = 0x800, scoped, tag = 'scratch operand']
  %s0 = inlined_call_operand.hbm [shape: f32[8,4,10], index: 0, kind: input, shape index: {}]
  %s1 = inlined_call_operand.hbm [shape: f32[4,32], index: 1, kind: input, shape index: {}]
  %s2 = inlined_call_operand.vmem [shape: bf16[10,32], index: 2, kind: input, shape index: {}]
  %s3 = inlined_call_operand.vmem [shape: f32[1,32], index: 3, kind: input, shape index: {}]
  %s4 = inlined_call_operand.vmem [shape: bf16[32,64], index: 4, kind: input, shape index: {}]
  %s5 = inlined_call_operand.hbm [shape: bf16[32,64], index: 5, kind: input, shape index: {}]
  %s6 = inlined_call_operand.vmem [shape: f32[1,64], index: 6, kind: input, shape index: {}]
  %s7 = inlined_call_operand.hbm [shape: bf16[32,36], index: 7, kind: input, shape index: {}]
  %s8 = inlined_call_operand.vmem [shape: f32[1,36], index: 8, kind: input, shape index: {}]
  %s9 = inlined_call_operand.vmem [shape: bf16[36,8], index: 9, kind: input, shape index: {}]
  %s10 = inlined_call_operand.vmem [shape: f32[1,8], index: 10, kind: input, shape index: {}]
  %s11 = inlined_call_operand.hbm [shape: f32[8,4,8], index: 11, kind: output, shape index: {0}]
  %s12 = inlined_call_operand.hbm [shape: f32[8,4,36], index: 12, kind: output, shape index: {1}]
  %s13 = inlined_call_operand.hbm [shape: f32[4,32], index: 13, kind: output, shape index: {2}]
  %14 = xla_tuple %s11, %s12, %s13
  %s15 = sld [smem:[#allocation0]]
  $region117: #{rnn_classifier_forward_seq.1} parent=0
    _
  %s17 = ssub.s32 1, %s15
  %s18 = scalar_select 0, %s17, %s15
  $region1: #{rnn_classifier_forward_seq.1} parent=0
    #allocation3 [shape = 'u8[4096]{0}', space=vmem, size = 0x1000, scoped, tag = 'input window, operand 0']
    #allocation4 [shape = 's32[2]{0}', space=sflag, size = 0x8, scoped, tag = 'scoped memory for rnn_classifier_forward_seq.1']
    #allocation5 [shape = 's32[2]{0}', space=sflag, size = 0x8, scoped, tag = 'scoped memory for rnn_classifier_forward_seq.1']
    #allocation6 [shape = 'u8[2048]{0}', space=vmem, size = 0x800, scoped, tag = 'input window, operand 1, single buffered']
    #allocation7 [shape = 's32[1]{0}', space=sflag, size = 0x4, scoped, tag = 'scoped memory for rnn_classifier_forward_seq.1']
    #allocation8 [shape = 'u8[8192]{0}', space=vmem, size = 0x2000, scoped, tag = 'input window, operand 5, single buffered']
    #allocation9 [shape = 'u8[8192]{0}', space=vmem, size = 0x2000, scoped, tag = 'input window, operand 7, single buffered']
    #allocation10 [shape = 's32[1]{0}', space=sflag, size = 0x4, scoped, tag = 'scoped memory for rnn_classifier_forward_seq.1']
    #allocation11 [shape = 'u8[4096]{0}', space=vmem, size = 0x1000, scoped, tag = 'output window, operand 0']
    #allocation12 [shape = 'u8[4096]{0}', space=vmem, size = 0x1000, scoped, tag = 'output window, operand 1']
    #allocation13 [shape = 's32[2]{0}', space=sflag, size = 0x8, scoped, tag = 'scoped memory for rnn_classifier_forward_seq.1']
    #allocation14 [shape = 'u8[2048]{0}', space=vmem, size = 0x800, scoped, tag = 'output window, operand 2, single buffered']
    %19 = vsyncpa [#allocation4], 0
    %s20 = scalar_lea.sflag [#allocation4], 1
    %21 = vsyncpa %s20, 0
    %22 = vsyncpa [#allocation7], 0
    %23 = vsyncpa [#allocation10], 0
    %24 = vsyncpa [#allocation5], 0
    %s25 = scalar_lea.sflag [#allocation5], 1
    %26 = vsyncpa %s25, 0
    %27 = vsyncpa [#allocation13], 0
    %s28 = scalar_lea.sflag [#allocation13], 1
    %29 = vsyncpa %s28, 0
    loop: start=0, step=1, limit=10
    $region2: #{rnn_classifier_forward_seq.1} parent=1 // loop_pre_header
      _
    $region3: #{rnn_classifier_forward_seq.1} parent=1 // loop_header
      %s31 = sphi 0, %s35
      %p32 = scmp.ge.s32.totalorder %s31, 10
      %s41 = sphi 0, %s43
      %s44 = sphi 0, %s41
      %s45 = sphi 0, %s44
      %s61 = sphi 0, %s45
      %s65 = sphi 0, %s65
      %s67 = sphi 0, %s65
      %s68 = sphi 0, %s67
      %s82 = sphi 0, %s68
      %s86 = sphi 0, %s86
      %s88 = sphi 0, %s86
      %s89 = sphi 0, %s88
      %s103 = sphi 0, %s89
      %s107 = sphi 0, %s107
      %s109 = sphi 0, %s107
      %s110 = sphi 0, %s109
      %s124 = sphi 0, %s110
      %s128 = sphi 0, %s128
      %s130 = sphi 0, %s128
      %s131 = sphi 0, %s130
      %s145 = sphi 0, %s131
      %s149 = sphi 0, %s149
      %s151 = sphi 0, %s149
      %s152 = sphi 0, %s151
      %s166 = sphi 0, %s152
      %s170 = sphi 0, %s170
      %s172 = sphi 0, %s170
      %s173 = sphi 0, %s172
      %s187 = sphi 0, %s173
      %s191 = sphi 0, %s191
      %s193 = sphi 0, %s191
      %s194 = sphi 0, %s193
      %s208 = sphi 0, %s194
      %s212 = sphi 0, %s212
      %s214 = sphi 0, %s212
      %s215 = sphi 0, %s214
      %s229 = sphi 0, %s215
      %s233 = sphi 0, %s233
      %s235 = sphi 0, %s233
      %s236 = sphi 0, %s235
      %s250 = sphi 0, %s236
      %s254 = sphi 0, %s254
      %s256 = sphi 0, %s254
      %s257 = sphi 0, %s256
      %s271 = sphi 0, %s257
      %s277 = sphi 0, %s279
      %s280 = sphi 0, %s277
      %s281 = sphi 0, %s280
      %s297 = sphi 0, %s281
      %s303 = sphi 0, %s305
      %s306 = sphi 0, %s303
      %s307 = sphi 0, %s306
      %s323 = sphi 0, %s307
      %s327 = sphi 0, %s327
      %s329 = sphi 0, %s327
      %s330 = sphi 0, %s329
      %s344 = sphi 0, %s330
    $region4: #{rnn_classifier_forward_seq.1} parent=1 // loop_header_branch
      %34 = sbr.rel (%p32) target = $region8
    $region5: #{rnn_classifier_forward_seq.1} parent=1 // loop_body
      %s36 = ssub.s32 %s31, 1
      %s37 = ssub.s32 %s31, 2
      %s38 = sadd.s32 %s31, 1
      %s39 = ssub.s32 %s31, %s38
      %p40 = scmp.eq.s32.totalorder %s39, 0
      %s42 = sadd.s32 %s41, 1
      %s43 = scalar_select %p40, %s41, %s42
      %p46 = pneg %p40
      %p47 = scmp.eq.s32.totalorder %s31, 7
      %p48 = por %p46, %p47
      %p49 = scmp.ne.s32.totalorder %s41, %s44
      %p50 = scmp.eq.s32.totalorder %s31, 0
      %p51 = por %p49, %p50
      %p52 = scmp.ne.s32.totalorder %s41, %s44
      %p53 = scmp.eq.s32.totalorder %s36, 7
      %p54 = por %p52, %p53
      %p55 = scmp.ne.s32.totalorder %s44, %s45
      %p56 = scmp.eq.s32.totalorder %s36, 0
      %p57 = por %p55, %p56
      %p58 = scmp.ne.s32.totalorder %s44, %s45
      %p59 = scmp.eq.s32.totalorder %s37, 7
      %p60 = por %p58, %p59
      %p62 = scmp.ne.s32.totalorder %s45, %s61
      %p63 = scmp.eq.s32.totalorder %s37, 0
      %p64 = por %p62, %p63
      %s66 = sadd.s32 %s65, 1
      %p69 = scmp.eq.s32.totalorder %s31, 7
      %p70 = scmp.ne.s32.totalorder %s65, %s67
      %p71 = scmp.eq.s32.totalorder %s31, 0
      %p72 = por %p70, %p71
      %p73 = scmp.ne.s32.totalorder %s65, %s67
      %p74 = scmp.eq.s32.totalorder %s36, 7
      %p75 = por %p73, %p74
      %p76 = scmp.ne.s32.totalorder %s67, %s68
      %p77 = scmp.eq.s32.totalorder %s36, 0
      %p78 = por %p76, %p77
      %p79 = scmp.ne.s32.totalorder %s67, %s68
      %p80 = scmp.eq.s32.totalorder %s37, 7
      %p81 = por %p79, %p80
      %p83 = scmp.ne.s32.totalorder %s68, %s82
      %p84 = scmp.eq.s32.totalorder %s37, 0
      %p85 = por %p83, %p84
      %s87 = sadd.s32 %s86, 1
      %p90 = scmp.eq.s32.totalorder %s31, 7
      %p91 = scmp.ne.s32.totalorder %s86, %s88
      %p92 = scmp.eq.s32.totalorder %s31, 0
      %p93 = por %p91, %p92
      %p94 = scmp.ne.s32.totalorder %s86, %s88
      %p95 = scmp.eq.s32.totalorder %s36, 7
      %p96 = por %p94, %p95
      %p97 = scmp.ne.s32.totalorder %s88, %s89
      %p98 = scmp.eq.s32.totalorder %s36, 0
      %p99 = por %p97, %p98
      %p100 = scmp.ne.s32.totalorder %s88, %s89
      %p101 = scmp.eq.s32.totalorder %s37, 7
      %p102 = por %p100, %p101
      %p104 = scmp.ne.s32.totalorder %s89, %s103
      %p105 = scmp.eq.s32.totalorder %s37, 0
      %p106 = por %p104, %p105
      %s108 = sadd.s32 %s107, 1
      %p111 = scmp.eq.s32.totalorder %s31, 7
      %p112 = scmp.ne.s32.totalorder %s107, %s109
      %p113 = scmp.eq.s32.totalorder %s31, 0
      %p114 = por %p112, %p113
      %p115 = scmp.ne.s32.totalorder %s107, %s109
      %p116 = scmp.eq.s32.totalorder %s36, 7
      %p117 = por %p115, %p116
      %p118 = scmp.ne.s32.totalorder %s109, %s110
      %p119 = scmp.eq.s32.totalorder %s36, 0
      %p120 = por %p118, %p119
      %p121 = scmp.ne.s32.totalorder %s109, %s110
      %p122 = scmp.eq.s32.totalorder %s37, 7
      %p123 = por %p121, %p122
      %p125 = scmp.ne.s32.totalorder %s110, %s124
      %p126 = scmp.eq.s32.totalorder %s37, 0
      %p127 = por %p125, %p126
      %s129 = sadd.s32 %s128, 1
      %p132 = scmp.eq.s32.totalorder %s31, 7
      %p133 = scmp.ne.s32.totalorder %s128, %s130
      %p134 = scmp.eq.s32.totalorder %s31, 0
      %p135 = por %p133, %p134
      %p136 = scmp.ne.s32.totalorder %s128, %s130
      %p137 = scmp.eq.s32.totalorder %s36, 7
      %p138 = por %p136, %p137
      %p139 = scmp.ne.s32.totalorder %s130, %s131
      %p140 = scmp.eq.s32.totalorder %s36, 0
      %p141 = por %p139, %p140
      %p142 = scmp.ne.s32.totalorder %s130, %s131
      %p143 = scmp.eq.s32.totalorder %s37, 7
      %p144 = por %p142, %p143
      %p146 = scmp.ne.s32.totalorder %s131, %s145
      %p147 = scmp.eq.s32.totalorder %s37, 0
      %p148 = por %p146, %p147
      %s150 = sadd.s32 %s149, 1
      %p153 = scmp.eq.s32.totalorder %s31, 7
      %p154 = scmp.ne.s32.totalorder %s149, %s151
      %p155 = scmp.eq.s32.totalorder %s31, 0
      %p156 = por %p154, %p155
      %p157 = scmp.ne.s32.totalorder %s149, %s151
      %p158 = scmp.eq.s32.totalorder %s36, 7
      %p159 = por %p157, %p158
      %p160 = scmp.ne.s32.totalorder %s151, %s152
      %p161 = scmp.eq.s32.totalorder %s36, 0
      %p162 = por %p160, %p161
      %p163 = scmp.ne.s32.totalorder %s151, %s152
      %p164 = scmp.eq.s32.totalorder %s37, 7
      %p165 = por %p163, %p164
      %p167 = scmp.ne.s32.totalorder %s152, %s166
      %p168 = scmp.eq.s32.totalorder %s37, 0
      %p169 = por %p167, %p168
      %s171 = sadd.s32 %s170, 1
      %p174 = scmp.eq.s32.totalorder %s31, 7
      %p175 = scmp.ne.s32.totalorder %s170, %s172
      %p176 = scmp.eq.s32.totalorder %s31, 0
      %p177 = por %p175, %p176
      %p178 = scmp.ne.s32.totalorder %s170, %s172
      %p179 = scmp.eq.s32.totalorder %s36, 7
      %p180 = por %p178, %p179
      %p181 = scmp.ne.s32.totalorder %s172, %s173
      %p182 = scmp.eq.s32.totalorder %s36, 0
      %p183 = por %p181, %p182
      %p184 = scmp.ne.s32.totalorder %s172, %s173
      %p185 = scmp.eq.s32.totalorder %s37, 7
      %p186 = por %p184, %p185
      %p188 = scmp.ne.s32.totalorder %s173, %s187
      %p189 = scmp.eq.s32.totalorder %s37, 0
      %p190 = por %p188, %p189
      %s192 = sadd.s32 %s191, 1
      %p195 = scmp.eq.s32.totalorder %s31, 7
      %p196 = scmp.ne.s32.totalorder %s191, %s193
      %p197 = scmp.eq.s32.totalorder %s31, 0
      %p198 = por %p196, %p197
      %p199 = scmp.ne.s32.totalorder %s191, %s193
      %p200 = scmp.eq.s32.totalorder %s36, 7
      %p201 = por %p199, %p200
      %p202 = scmp.ne.s32.totalorder %s193, %s194
      %p203 = scmp.eq.s32.totalorder %s36, 0
      %p204 = por %p202, %p203
      %p205 = scmp.ne.s32.totalorder %s193, %s194
      %p206 = scmp.eq.s32.totalorder %s37, 7
      %p207 = por %p205, %p206
      %p209 = scmp.ne.s32.totalorder %s194, %s208
      %p210 = scmp.eq.s32.totalorder %s37, 0
      %p211 = por %p209, %p210
      %s213 = sadd.s32 %s212, 1
      %p216 = scmp.eq.s32.totalorder %s31, 7
      %p217 = scmp.ne.s32.totalorder %s212, %s214
      %p218 = scmp.eq.s32.totalorder %s31, 0
      %p219 = por %p217, %p218
      %p220 = scmp.ne.s32.totalorder %s212, %s214
      %p221 = scmp.eq.s32.totalorder %s36, 7
      %p222 = por %p220, %p221
      %p223 = scmp.ne.s32.totalorder %s214, %s215
      %p224 = scmp.eq.s32.totalorder %s36, 0
      %p225 = por %p223, %p224
      %p226 = scmp.ne.s32.totalorder %s214, %s215
      %p227 = scmp.eq.s32.totalorder %s37, 7
      %p228 = por %p226, %p227
      %p230 = scmp.ne.s32.totalorder %s215, %s229
      %p231 = scmp.eq.s32.totalorder %s37, 0
      %p232 = por %p230, %p231
      %s234 = sadd.s32 %s233, 1
      %p237 = scmp.eq.s32.totalorder %s31, 7
      %p238 = scmp.ne.s32.totalorder %s233, %s235
      %p239 = scmp.eq.s32.totalorder %s31, 0
      %p240 = por %p238, %p239
      %p241 = scmp.ne.s32.totalorder %s233, %s235
      %p242 = scmp.eq.s32.totalorder %s36, 7
      %p243 = por %p241, %p242
      %p244 = scmp.ne.s32.totalorder %s235, %s236
      %p245 = scmp.eq.s32.totalorder %s36, 0
      %p246 = por %p244, %p245
      %p247 = scmp.ne.s32.totalorder %s235, %s236
      %p248 = scmp.eq.s32.totalorder %s37, 7
      %p249 = por %p247, %p248
      %p251 = scmp.ne.s32.totalorder %s236, %s250
      %p252 = scmp.eq.s32.totalorder %s37, 0
      %p253 = por %p251, %p252
      %s255 = sadd.s32 %s254, 1
      %p258 = scmp.eq.s32.totalorder %s31, 7
      %p259 = scmp.ne.s32.totalorder %s254, %s256
      %p260 = scmp.eq.s32.totalorder %s31, 0
      %p261 = por %p259, %p260
      %p262 = scmp.ne.s32.totalorder %s254, %s256
      %p263 = scmp.eq.s32.totalorder %s36, 7
      %p264 = por %p262, %p263
      %p265 = scmp.ne.s32.totalorder %s256, %s257
      %p266 = scmp.eq.s32.totalorder %s36, 0
      %p267 = por %p265, %p266
      %p268 = scmp.ne.s32.totalorder %s256, %s257
      %p269 = scmp.eq.s32.totalorder %s37, 7
      %p270 = por %p268, %p269
      %p272 = scmp.ne.s32.totalorder %s257, %s271
      %p273 = scmp.eq.s32.totalorder %s37, 0
      %p274 = por %p272, %p273
      %s275 = ssub.s32 %s31, %s38
      %p276 = scmp.eq.s32.totalorder %s275, 0
      %s278 = sadd.s32 %s277, 1
      %s279 = scalar_select %p276, %s277, %s278
      %p282 = pneg %p276
      %p283 = scmp.eq.s32.totalorder %s31, 7
      %p284 = por %p282, %p283
      %p285 = scmp.ne.s32.totalorder %s277, %s280
      %p286 = scmp.eq.s32.totalorder %s31, 0
      %p287 = por %p285, %p286
      %p288 = scmp.ne.s32.totalorder %s277, %s280
      %p289 = scmp.eq.s32.totalorder %s36, 7
      %p290 = por %p288, %p289
      %p291 = scmp.ne.s32.totalorder %s280, %s281
      %p292 = scmp.eq.s32.totalorder %s36, 0
      %p293 = por %p291, %p292
      %p294 = scmp.ne.s32.totalorder %s280, %s281
      %p295 = scmp.eq.s32.totalorder %s37, 7
      %p296 = por %p294, %p295
      %p298 = scmp.ne.s32.totalorder %s281, %s297
      %p299 = scmp.eq.s32.totalorder %s37, 0
      %p300 = por %p298, %p299
      %s301 = ssub.s32 %s31, %s38
      %p302 = scmp.eq.s32.totalorder %s301, 0
      %s304 = sadd.s32 %s303, 1
      %s305 = scalar_select %p302, %s303, %s304
      %p308 = pneg %p302
      %p309 = scmp.eq.s32.totalorder %s31, 7
      %p310 = por %p308, %p309
      %p311 = scmp.ne.s32.totalorder %s303, %s306
      %p312 = scmp.eq.s32.totalorder %s31, 0
      %p313 = por %p311, %p312
      %p314 = scmp.ne.s32.totalorder %s303, %s306
      %p315 = scmp.eq.s32.totalorder %s36, 7
      %p316 = por %p314, %p315
      %p317 = scmp.ne.s32.totalorder %s306, %s307
      %p318 = scmp.eq.s32.totalorder %s36, 0
      %p319 = por %p317, %p318
      %p320 = scmp.ne.s32.totalorder %s306, %s307
      %p321 = scmp.eq.s32.totalorder %s37, 7
      %p322 = por %p320, %p321
      %p324 = scmp.ne.s32.totalorder %s307, %s323
      %p325 = scmp.eq.s32.totalorder %s37, 0
      %p326 = por %p324, %p325
      %s328 = sadd.s32 %s327, 1
      %p331 = scmp.eq.s32.totalorder %s31, 7
      %p332 = scmp.ne.s32.totalorder %s327, %s329
      %p333 = scmp.eq.s32.totalorder %s31, 0
      %p334 = por %p332, %p333
      %p335 = scmp.ne.s32.totalorder %s327, %s329
      %p336 = scmp.eq.s32.totalorder %s36, 7
      %p337 = por %p335, %p336
      %p338 = scmp.ne.s32.totalorder %s329, %s330
      %p339 = scmp.eq.s32.totalorder %s36, 0
      %p340 = por %p338, %p339
      %p341 = scmp.ne.s32.totalorder %s329, %s330
      %p342 = scmp.eq.s32.totalorder %s37, 7
      %p343 = por %p341, %p342
      %p345 = scmp.ne.s32.totalorder %s330, %s344
      %p346 = scmp.eq.s32.totalorder %s37, 0
      %p347 = por %p345, %p346
      %p348 = scmp.le.s32.totalorder 1, %s31
      %p349 = scmp.lt.s32.totalorder %s31, 9
      %p350 = pnand %p348, %p349
      %p351 = pneg %p350
      // Predicated region
      $region9: #{rnn_classifier_forward_seq.1} parent=5 // pred_check
        _
      $region10: #{rnn_classifier_forward_seq.1} parent=5 // pred_check_branch
        %353 = sbr.rel (%p350) target = $region12
      $region11: #{rnn_classifier_forward_seq.1} parent=5 // pred_region
        %s354 = ssub.s32 %s31, 1
        // Predicated region
        $region13: #{rnn_classifier_forward_seq.1} parent=11 // pred_check
          %p355 = pneg %p78
        $region14: #{rnn_classifier_forward_seq.1} parent=11 // pred_check_branch
          %357 = sbr.rel (%p355) target = $region16
        $region15: #{rnn_classifier_forward_seq.1} parent=11 // pred_region
          %359 = vsyncadd [#allocation7], 0
          %s361 = sshll.u32 %s1, 4
          %s362 = int_to_ptr.hbm [resolvable:$true] %s361
          %s363 = sshll.u32 [#allocation6], 4
          %s364 = int_to_ptr.vmem [resolvable:$true] %s363
          %366 = dma.hbm_to_vmem [thread:$0]  %s362, 64, %s364, [#allocation7]
        $region16: #{rnn_classifier_forward_seq.1} parent=11 // pred_fallthru
          _
        // Predicated region
        $region17: #{rnn_classifier_forward_seq.1} parent=11 // pred_check
          %p367 = pneg %p99
        $region18: #{rnn_classifier_forward_seq.1} parent=11 // pred_check_branch
          %369 = sbr.rel (%p367) target = $region20
        $region19: #{rnn_classifier_forward_seq.1} parent=11 // pred_region
          _
        $region20: #{rnn_classifier_forward_seq.1} parent=11 // pred_fallthru
          _
        // Predicated region
        $region21: #{rnn_classifier_forward_seq.1} parent=11 // pred_check
          %p370 = pneg %p120
        $region22: #{rnn_classifier_forward_seq.1} parent=11 // pred_check_branch
          %372 = sbr.rel (%p370) target = $region24
        $region23: #{rnn_classifier_forward_seq.1} parent=11 // pred_region
          _
        $region24: #{rnn_classifier_forward_seq.1} parent=11 // pred_fallthru
          _
        // Predicated region
        $region25: #{rnn_classifier_forward_seq.1} parent=11 // pred_check
          %p373 = pneg %p141
        $region26: #{rnn_classifier_forward_seq.1} parent=11 // pred_check_branch
          %375 = sbr.rel (%p373) target = $region28
        $region27: #{rnn_classifier_forward_seq.1} parent=11 // pred_region
          _
        $region28: #{rnn_classifier_forward_seq.1} parent=11 // pred_fallthru
          _
        // Predicated region
        $region29: #{rnn_classifier_forward_seq.1} parent=11 // pred_check
          %p376 = pneg %p162
        $region30: #{rnn_classifier_forward_seq.1} parent=11 // pred_check_branch
          %378 = sbr.rel (%p376) target = $region32
        $region31: #{rnn_classifier_forward_seq.1} parent=11 // pred_region
          %380 = vsyncadd [#allocation7], 0
          %s381 = sshll.u32 %s5, 4
          %s382 = int_to_ptr.hbm [resolvable:$true] %s381
          %s383 = sshll.u32 [#allocation8], 4
          %s384 = int_to_ptr.vmem [resolvable:$true] %s383
          %389 = dma.hbm_to_vmem [thread:$0]  %s382, 256, %s384, [#allocation7], 64, 64, 4
        $region32: #{rnn_classifier_forward_seq.1} parent=11 // pred_fallthru
          _
        // Predicated region
        $region33: #{rnn_classifier_forward_seq.1} parent=11 // pred_check
          %p390 = pneg %p183
        $region34: #{rnn_classifier_forward_seq.1} parent=11 // pred_check_branch
          %392 = sbr.rel (%p390) target = $region36
        $region35: #{rnn_classifier_forward_seq.1} parent=11 // pred_region
          _
        $region36: #{rnn_classifier_forward_seq.1} parent=11 // pred_fallthru
          _
        // Predicated region
        $region37: #{rnn_classifier_forward_seq.1} parent=11 // pred_check
          %p393 = pneg %p204
        $region38: #{rnn_classifier_forward_seq.1} parent=11 // pred_check_branch
          %395 = sbr.rel (%p393) target = $region40
        $region39: #{rnn_classifier_forward_seq.1} parent=11 // pred_region
          %397 = vsyncadd [#allocation10], 0
          %s398 = sshll.u32 %s7, 4
          %s399 = int_to_ptr.hbm [resolvable:$true] %s398
          %s400 = sshll.u32 [#allocation9], 4
          %s401 = int_to_ptr.vmem [resolvable:$true] %s400
          %406 = dma.hbm_to_vmem [thread:$0]  %s399, 256, %s401, [#allocation10], 64, 64, 4
        $region40: #{rnn_classifier_forward_seq.1} parent=11 // pred_fallthru
          _
        // Predicated region
        $region41: #{rnn_classifier_forward_seq.1} parent=11 // pred_check
          %p407 = pneg %p225
        $region42: #{rnn_classifier_forward_seq.1} parent=11 // pred_check_branch
          %409 = sbr.rel (%p407) target = $region44
        $region43: #{rnn_classifier_forward_seq.1} parent=11 // pred_region
          _
        $region44: #{rnn_classifier_forward_seq.1} parent=11 // pred_fallthru
          _
        // Predicated region
        $region45: #{rnn_classifier_forward_seq.1} parent=11 // pred_check
          %p410 = pneg %p246
        $region46: #{rnn_classifier_forward_seq.1} parent=11 // pred_check_branch
          %412 = sbr.rel (%p410) target = $region48
        $region47: #{rnn_classifier_forward_seq.1} parent=11 // pred_region
          _
        $region48: #{rnn_classifier_forward_seq.1} parent=11 // pred_fallthru
          _
        // Predicated region
        $region49: #{rnn_classifier_forward_seq.1} parent=11 // pred_check
          %p413 = pneg %p267
        $region50: #{rnn_classifier_forward_seq.1} parent=11 // pred_check_branch
          %415 = sbr.rel (%p413) target = $region52
        $region51: #{rnn_classifier_forward_seq.1} parent=11 // pred_region
          _
        $region52: #{rnn_classifier_forward_seq.1} parent=11 // pred_fallthru
          _
      $region12: #{rnn_classifier_forward_seq.1} parent=5 // pred_fallthru
        _
      %p416 = scmp.lt.s32.totalorder %s31, 8
      // Predicated region
      $region53: #{rnn_classifier_forward_seq.1} parent=5 // pred_check
        %p417 = pneg %p416
      $region54: #{rnn_classifier_forward_seq.1} parent=5 // pred_check_branch
        %419 = sbr.rel (%p417) target = $region56
      $region55: #{rnn_classifier_forward_seq.1} parent=5 // pred_region
        // Predicated region
        $region57: #{rnn_classifier_forward_seq.1} parent=55 // pred_check
          %p420 = pneg %p51
        $region58: #{rnn_classifier_forward_seq.1} parent=55 // pred_check_branch
          %422 = sbr.rel (%p420) target = $region60
        $region59: #{rnn_classifier_forward_seq.1} parent=55 // pred_region
          %s423 = sand.u32 %s41, 1
          %s424 = scalar_lea.sflag [#allocation4], %s423
          %s425 = sand.u32 %s41, 1
          %s426 = smul.addr %s425, 4
          %s427 = scalar_lea.vmem [#allocation3], %s426
          %429 = vsyncadd %s424, 0
          %s430 = smul.addr %s31, 4
          %s431 = scalar_lea.hbm %s0, %s430
          %s433 = sshll.u32 %s431, 4
          %s434 = int_to_ptr.hbm [resolvable:$true] %s433
          %s435 = sshll.u32 %s427, 4
          %s436 = int_to_ptr.vmem [resolvable:$true] %s435
          %438 = dma.hbm_to_vmem [thread:$0]  %s434, 64, %s436, %s424
        $region60: #{rnn_classifier_forward_seq.1} parent=55 // pred_fallthru
          _
      $region56: #{rnn_classifier_forward_seq.1} parent=5 // pred_fallthru
        _
      %p439 = scmp.le.s32.totalorder 1, %s31
      %p440 = scmp.lt.s32.totalorder %s31, 9
      %p441 = pnand %p439, %p440
      %p442 = pneg %p441
      // Predicated region
      $region61: #{rnn_classifier_forward_seq.1} parent=5 // pred_check
        _
      $region62: #{rnn_classifier_forward_seq.1} parent=5 // pred_check_branch
        %444 = sbr.rel (%p441) target = $region64
      $region63: #{rnn_classifier_forward_seq.1} parent=5 // pred_region
        %s445 = ssub.s32 %s31, 1
        %s446 = sand.u32 %s44, 1
        %s447 = scalar_lea.sflag [#allocation4], %s446
        %s448 = sand.u32 %s44, 1
        %s449 = smul.addr %s448, 4
        %s450 = scalar_lea.vmem [#allocation3], %s449
        // Predicated region
        $region65: #{rnn_classifier_forward_seq.1} parent=63 // pred_check
          %p451 = pneg %p57
        $region66: #{rnn_classifier_forward_seq.1} parent=63 // pred_check_branch
          %453 = sbr.rel (%p451) target = $region68
        $region67: #{rnn_classifier_forward_seq.1} parent=63 // pred_region
          %455 = dma.done %s447, 64
        $region68: #{rnn_classifier_forward_seq.1} parent=63 // pred_fallthru
          _
        // Predicated region
        $region69: #{rnn_classifier_forward_seq.1} parent=63 // pred_check
          %p456 = pneg %p78
        $region70: #{rnn_classifier_forward_seq.1} parent=63 // pred_check_branch
          %458 = sbr.rel (%p456) target = $region72
        $region71: #{rnn_classifier_forward_seq.1} parent=63 // pred_region
          %460 = dma.done [#allocation7], 64
        $region72: #{rnn_classifier_forward_seq.1} parent=63 // pred_fallthru
          _
        // Predicated region
        $region73: #{rnn_classifier_forward_seq.1} parent=63 // pred_check
          %p461 = pneg %p162
        $region74: #{rnn_classifier_forward_seq.1} parent=63 // pred_check_branch
          %463 = sbr.rel (%p461) target = $region76
        $region75: #{rnn_classifier_forward_seq.1} parent=63 // pred_region
          %465 = dma.done [#allocation7], 256
        $region76: #{rnn_classifier_forward_seq.1} parent=63 // pred_fallthru
          _
        // Predicated region
        $region77: #{rnn_classifier_forward_seq.1} parent=63 // pred_check
          %p466 = pneg %p204
        $region78: #{rnn_classifier_forward_seq.1} parent=63 // pred_check_branch
          %468 = sbr.rel (%p466) target = $region80
        $region79: #{rnn_classifier_forward_seq.1} parent=63 // pred_region
          %470 = dma.done [#allocation10], 256
        $region80: #{rnn_classifier_forward_seq.1} parent=63 // pred_fallthru
          _
        %s471 = sand.u32 %s44, 1
        %s472 = scalar_lea.sflag [#allocation4], %s471
        %s473 = sand.u32 %s44, 1
        %s474 = smul.addr %s473, 4
        %s475 = scalar_lea.vmem [#allocation3], %s474
        %p476 = pneg %p57
        %p477 = pneg %p54
        %p478 = pneg %p78
        %p479 = pneg %p75
        %p480 = pneg %p99
        %p481 = pneg %p96
        %p482 = pneg %p120
        %p483 = pneg %p117
        %p484 = pneg %p141
        %p485 = pneg %p138
        %p486 = pneg %p162
        %p487 = pneg %p159
        %p488 = pneg %p183
        %p489 = pneg %p180
        %p490 = pneg %p204
        %p491 = pneg %p201
        %p492 = pneg %p225
        %p493 = pneg %p222
        %p494 = pneg %p246
        %p495 = pneg %p243
        %p496 = pneg %p267
        %p497 = pneg %p264
        %p498 = pneg %p293
        %p499 = pneg %p290
        %s500 = sand.u32 %s280, 1
        %s501 = scalar_lea.sflag [#allocation5], %s500
        %s502 = sand.u32 %s280, 1
        %s503 = smul.addr %s502, 4
        %s504 = scalar_lea.vmem [#allocation11], %s503
        %p505 = pneg %p319
        %p506 = pneg %p316
        %s507 = sand.u32 %s36, 1
        %s508 = scalar_lea.sflag [#allocation13], %s507
        %s509 = sand.u32 %s306, 1
        %s510 = smul.addr %s509, 4
        %s511 = scalar_lea.vmem [#allocation12], %s510
        %p512 = pneg %p340
        %p513 = pneg %p337
        %p515 = scmp.eq.s32.totalorder %s36, 0
        // Predicated region
        $region81: #{rnn_classifier_forward_seq.1} parent=63 // pred_check
          %p516 = pneg %p515
        $region82: #{rnn_classifier_forward_seq.1} parent=63 // pred_check_branch
          %518 = sbr.rel (%p516) target = $region84
        $region83: #{rnn_classifier_forward_seq.1} parent=63 // pred_region
          %v519 = vld [vmem:[#allocation6] sm:$0xf]
          %vm520 = vcmask 257024
          %521 = vst.msk [vmem:[#allocation2] sm:$0xf] %vm520, %v519
        $region84: #{rnn_classifier_forward_seq.1} parent=63 // pred_fallthru
          _
        %v522 = vld [vmem:[%s450] sm:$0xf]
        %v523 = vld [vmem:[#allocation2] sm:$0xf]
        %v524 = vpack.c.bf16 %v522, %v522
        %v525 = vld [vmem:[%s2] sm:$0xf]
        %v526 = vld [vmem:[%s2 + $0x4] sm:$0x1]
        %v527 = vld [vmem:[%s3] sm:$0x1]
        %v529 = vperm.slane %v527, 0
        %v533 = vunpack.c.l.b16 %v525
        %v534 = vunpack.c.l.b16 %v526
        %v535 = vpack.c.b16 %v534, %v533
        %vm536 = vcmask 80896
        %v538 = vsel %vm536, %v524, 0
        %vm540 = vcmask 1044480
        %v542 = vsel %vm540, %v535, 0
        %544 = vmatpush.bf16.msra.mxu0 0
        %545 = vmatpush.bf16.msra.mxu0 0
        %546 = vmatpush.bf16.msra.mxu0 0
        %547 = vmatpush.bf16.msra.mxu0 0
        %548 = vmatpush.bf16.msra.mxu0 0
        %549 = vmatpush.bf16.msra.mxu0 0
        %550 = vmatpush.bf16.msra.mxu0 0
        %551 = vmatpush.bf16.msra.mxu0 %v542
        %552 = vmatmul.bf16.gmra.mxu0 %v538
        %v553 = vpop.f32.mrf.mxu0
        %v554 = vadd.f32 %v529, %v553
        %v555 = vpop.f32.mrf.mxu0
        %556 = vdwg.mxu0
        %vm557 = vcmp.gt.f32.partialorder %v554, 0.0
        %v558 = vmul.f32 %v554, 0.1
        %v559 = vsel %vm557, %v554, %v558
        %v560 = vpack.c.bf16 %v559, %v559
        %v561 = vld [vmem:[%s4] sm:$0xf]
        %v562 = vld [vmem:[%s4 + $0x4] sm:$0xf]
        %v563 = vld [vmem:[%s4 + $0x8] sm:$0xf]
        %v564 = vld [vmem:[%s4 + $0xc] sm:$0xf]
        %v565 = vpack.c.bf16 %v523, %v523
        %v566 = vld [vmem:[#allocation8] sm:$0xf]
        %v567 = vld [vmem:[#allocation8 + $0x4] sm:$0xf]
        %v568 = vld [vmem:[#allocation8 + $0x8] sm:$0xf]
        %v569 = vld [vmem:[#allocation8 + $0xc] sm:$0xf]
        %v574 = vunpack.c.l.b16 %v566
        %v575 = vunpack.c.l.b16 %v567
        %v576 = vunpack.c.l.b16 %v568
        %v577 = vunpack.c.l.b16 %v569
        %v578 = vpack.c.b16 %v575, %v574
        %v579 = vpack.c.b16 %v577, %v576
        %vm582 = vcmask 261120
        %v584 = vsel %vm582, %v565, 0
        %586 = vmatpush.bf16.msra.mxu0 0
        %587 = vmatpush.bf16.msra.mxu0 0
        %588 = vmatpush.bf16.msra.mxu0 0
        %589 = vmatpush.bf16.msra.mxu0 0
        %590 = vmatpush.bf16.msra.mxu0 0
        %591 = vmatpush.bf16.msra.mxu0 0
        %592 = vmatpush.bf16.msra.mxu0 %v579
        %593 = vmatpush.bf16.msra.mxu0 %v578
        %594 = vmatmul.bf16.gmra.mxu0 %v584
        %v595 = vpop.f32.mrf.mxu0
        %v596 = vadd.f32 0.0, %v595
        %v597 = vpop.f32.mrf.mxu0
        %598 = vdwg.mxu0
        %v603 = vunpack.c.l.b16 %v561
        %v604 = vunpack.c.l.b16 %v562
        %v605 = vunpack.c.l.b16 %v563
        %v606 = vunpack.c.l.b16 %v564
        %v607 = vpack.c.b16 %v604, %v603
        %v608 = vpack.c.b16 %v606, %v605
        %v612 = vsel %vm582, %v560, 0
        %614 = vmatpush.bf16.msra.mxu0 0
        %615 = vmatpush.bf16.msra.mxu0 0
        %616 = vmatpush.bf16.msra.mxu0 0
        %617 = vmatpush.bf16.msra.mxu0 0
        %618 = vmatpush.bf16.msra.mxu0 0
        %619 = vmatpush.bf16.msra.mxu0 0
        %620 = vmatpush.bf16.msra.mxu0 %v608
        %621 = vmatpush.bf16.msra.mxu0 %v607
        %622 = vmatmul.bf16.gmra.mxu0 %v612
        %v623 = vpop.f32.mrf.mxu0
        %v624 = vadd.f32 %v596, %v623
        %v625 = vpop.f32.mrf.mxu0
        %626 = vdwg.mxu0
        %v627 = vld [vmem:[%s6] sm:$0x1]
        %v629 = vperm.slane %v627, 0
        %v631 = vadd.f32 %v624, %v629
        %v632 = vpack.c.bf16 %v631, %v631
        %v633 = vld [vmem:[#allocation9] sm:$0xf]
        %v634 = vld [vmem:[#allocation9 + $0x4] sm:$0xf]
        %v635 = vld [vmem:[#allocation9 + $0x8] sm:$0xf]
        %v636 = vld [vmem:[#allocation9 + $0xc] sm:$0xf]
        %v637 = vld [vmem:[%s8] sm:$0x1]
        %v639 = vperm.slane %v637, 0
        %642 = vrot.lane.b32.xlu0 %v632, 96
        %v643 = vpop.permute.xlu0 %642
        %v648 = vunpack.c.l.b16 %v633
        %v649 = vunpack.c.l.b16 %v634
        %v650 = vunpack.c.l.b16 %v635
        %v651 = vunpack.c.l.b16 %v636
        %v652 = vpack.c.b16 %v649, %v648
        %v653 = vpack.c.b16 %v651, %v650
        %v657 = vsel %vm582, %v643, 0
        %659 = vmatpush.bf16.msra.mxu0 0
        %660 = vmatpush.bf16.msra.mxu0 0
        %661 = vmatpush.bf16.msra.mxu0 0
        %662 = vmatpush.bf16.msra.mxu0 0
        %663 = vmatpush.bf16.msra.mxu0 0
        %664 = vmatpush.bf16.msra.mxu0 0
        %665 = vmatpush.bf16.msra.mxu0 %v653
        %666 = vmatpush.bf16.msra.mxu0 %v652
        %667 = vmatmul.bf16.gmra.mxu0 %v657
        %v668 = vpop.f32.mrf.mxu0
        %v669 = vadd.f32 %v639, %v668
        %v670 = vpop.f32.mrf.mxu0
        %671 = vdwg.mxu0
        %v672 = vxor.u32 %v669, 2147483648
        %v673 = vmul.f32 %v672, 1.442695
        %v674 = vpow.pop %v673
        %v675 = vadd.f32 %v674, 1.0
        %v676 = vrcp.pop %v675
        %v677 = vmul.f32 %v675, %v676
        %v678 = vsub.f32 1.0, %v677
        %v679 = vmul.f32 %v676, %v678
        %v680 = vadd.f32 %v676, %v679
        %vm681 = vweird.f32 %v675
        %vm682 = vweird.f32 %v676
        %vm683 = vmor %vm681, %vm682
        %v684 = vsel %vm683, %v676, %v680
        %v685 = vand.u32 2147483647, %v675
        %vm686 = vcmp.eq.f32.partialorder %v685, 8.507059e+37
        %v687 = vand.u32 %v675, 2147483648
        %v688 = vor.u32 1.1754944e-38, %v687
        %v689 = vsel %vm686, %v688, %v684
        %v690 = vmul.f32 1.0, %v689
        %v691 = vpack.c.bf16 %v690, %v690
        %v692 = vld [vmem:[%s9] sm:$0xf]
        %v693 = vld [vmem:[%s9 + $0x4] sm:$0xf]
        %v694 = vld [vmem:[%s9 + $0x8] sm:$0xf]
        %v695 = vld [vmem:[%s9 + $0xc] sm:$0xf]
        %v696 = vld [vmem:[%s9 + $0x10] sm:$0x3]
        %v697 = vld [vmem:[%s10] sm:$0x1]
        %v699 = vperm.slane %v697, 0
        %v706 = vunpack.c.l.b16 %v692
        %v707 = vunpack.c.l.b16 %v693
        %v708 = vunpack.c.l.b16 %v694
        %v709 = vunpack.c.l.b16 %v695
        %v710 = vunpack.c.l.b16 %v696
        %v711 = vpack.c.b16 %v707, %v706
        %v712 = vpack.c.b16 %v709, %v708
        %v713 = vpack.c.b16 %v710, %v710
        %vm716 = vcmask 293888
        %v718 = vsel %vm716, %v691, 0
        %vm720 = vcmask 1041408
        %v722 = vsel %vm720, %v713, 0
        %724 = vmatpush.bf16.msra.mxu0 0
        %725 = vmatpush.bf16.msra.mxu0 0
        %726 = vmatpush.bf16.msra.mxu0 0
        %727 = vmatpush.bf16.msra.mxu0 0
        %728 = vmatpush.bf16.msra.mxu0 0
        %729 = vmatpush.bf16.msra.mxu0 %v722
        %730 = vmatpush.bf16.msra.mxu0 %v712
        %731 = vmatpush.bf16.msra.mxu0 %v711
        %732 = vmatmul.bf16.gmra.mxu0 %v718
        %v733 = vpop.f32.mrf.mxu0
        %v734 = vadd.f32 %v699, %v733
        %v735 = vpop.f32.mrf.mxu0
        %736 = vdwg.mxu0
        %vm737 = vcmask 60416
        %738 = vst.msk [vmem:[%s504] sm:$0xf] %vm737, %v734
        %vm739 = vcmask 289792
        %740 = vst.msk [vmem:[%s511] sm:$0xf] %vm739, %v669
        %vm741 = vcmask 257024
        %742 = vst.msk [vmem:[#allocation2] sm:$0xf] %vm741, %v631
        %p743 = scmp.eq.s32.totalorder %s36, 7
        // Predicated region
        $region85: #{rnn_classifier_forward_seq.1} parent=63 // pred_check
          %p744 = pneg %p743
        $region86: #{rnn_classifier_forward_seq.1} parent=63 // pred_check_branch
          %746 = sbr.rel (%p744) target = $region88
        $region87: #{rnn_classifier_forward_seq.1} parent=63 // pred_region
          %747 = vst.msk [vmem:[#allocation14] sm:$0xf] %vm741, %v631
        $region88: #{rnn_classifier_forward_seq.1} parent=63 // pred_fallthru
          _
        %s748 = sand.u32 %s280, 1
        %s749 = scalar_lea.sflag [#allocation5], %s748
        %s750 = sand.u32 %s280, 1
        %s751 = smul.addr %s750, 4
        %s752 = scalar_lea.vmem [#allocation11], %s751
        %s753 = sand.u32 %s36, 1
        %s754 = scalar_lea.sflag [#allocation13], %s753
        %s755 = sand.u32 %s306, 1
        %s756 = smul.addr %s755, 4
        %s757 = scalar_lea.vmem [#allocation12], %s756
        // Predicated region
        $region89: #{rnn_classifier_forward_seq.1} parent=63 // pred_check
          %p758 = pneg %p290
        $region90: #{rnn_classifier_forward_seq.1} parent=63 // pred_check_branch
          %760 = sbr.rel (%p758) target = $region92
        $region91: #{rnn_classifier_forward_seq.1} parent=63 // pred_region
          %762 = vsyncadd %s749, 0
          %s763 = smul.addr %s36, 4
          %s764 = scalar_lea.hbm %s11, %s763
          %s766 = sshll.u32 %s752, 4
          %s767 = int_to_ptr.vmem [resolvable:$true] %s766
          %s768 = sshll.u32 %s764, 4
          %s769 = int_to_ptr.hbm [resolvable:$true] %s768
          %771 = dma.vmem_to_hbm [thread:$0]  %s767, 64, %s769, %s749
        $region92: #{rnn_classifier_forward_seq.1} parent=63 // pred_fallthru
          _
        // Predicated region
        $region93: #{rnn_classifier_forward_seq.1} parent=63 // pred_check
          %p772 = pneg %p316
        $region94: #{rnn_classifier_forward_seq.1} parent=63 // pred_check_branch
          %774 = sbr.rel (%p772) target = $region96
        $region95: #{rnn_classifier_forward_seq.1} parent=63 // pred_region
          %776 = vsyncadd %s754, 0
          %s777 = smul.addr %s36, 4
          %s778 = scalar_lea.hbm %s12, %s777
          %s780 = sshll.u32 %s757, 4
          %s781 = int_to_ptr.vmem [resolvable:$true] %s780
          %s782 = sshll.u32 %s778, 4
          %s783 = int_to_ptr.hbm [resolvable:$true] %s782
          %785 = dma.vmem_to_hbm [thread:$0]  %s781, 64, %s783, %s754
        $region96: #{rnn_classifier_forward_seq.1} parent=63 // pred_fallthru
          _
        // Predicated region
        $region97: #{rnn_classifier_forward_seq.1} parent=63 // pred_check
          %p786 = pneg %p337
        $region98: #{rnn_classifier_forward_seq.1} parent=63 // pred_check_branch
          %788 = sbr.rel (%p786) target = $region100
        $region99: #{rnn_classifier_forward_seq.1} parent=63 // pred_region
          %790 = vsyncadd [#allocation13], 0
          %s792 = sshll.u32 [#allocation14], 4
          %s793 = int_to_ptr.vmem [resolvable:$true] %s792
          %s794 = sshll.u32 %s13, 4
          %s795 = int_to_ptr.hbm [resolvable:$true] %s794
          %797 = dma.vmem_to_hbm [thread:$0]  %s793, 64, %s795, [#allocation13]
        $region100: #{rnn_classifier_forward_seq.1} parent=63 // pred_fallthru
          _
        // Predicated region
        $region101: #{rnn_classifier_forward_seq.1} parent=63 // pred_check
          %p798 = pneg %p337
        $region102: #{rnn_classifier_forward_seq.1} parent=63 // pred_check_branch
          %800 = sbr.rel (%p798) target = $region104
        $region103: #{rnn_classifier_forward_seq.1} parent=63 // pred_region
          %802 = dma.done [#allocation13], 64
        $region104: #{rnn_classifier_forward_seq.1} parent=63 // pred_fallthru
          _
      $region64: #{rnn_classifier_forward_seq.1} parent=5 // pred_fallthru
        _
      %p803 = scmp.le.s32.totalorder 2, %s31
      // Predicated region
      $region105: #{rnn_classifier_forward_seq.1} parent=5 // pred_check
        %p804 = pneg %p803
      $region106: #{rnn_classifier_forward_seq.1} parent=5 // pred_check_branch
        %806 = sbr.rel (%p804) target = $region108
      $region107: #{rnn_classifier_forward_seq.1} parent=5 // pred_region
        %s807 = ssub.s32 %s31, 2
        // Predicated region
        $region109: #{rnn_classifier_forward_seq.1} parent=107 // pred_check
          %p808 = pneg %p296
        $region110: #{rnn_classifier_forward_seq.1} parent=107 // pred_check_branch
          %810 = sbr.rel (%p808) target = $region112
        $region111: #{rnn_classifier_forward_seq.1} parent=107 // pred_region
          %s811 = sand.u32 %s281, 1
          %s812 = scalar_lea.sflag [#allocation5], %s811
          %s813 = sand.u32 %s281, 1
          %s814 = smul.addr %s813, 4
          %s815 = scalar_lea.vmem [#allocation11], %s814
          %817 = dma.done %s812, 64
        $region112: #{rnn_classifier_forward_seq.1} parent=107 // pred_fallthru
          _
        // Predicated region
        $region113: #{rnn_classifier_forward_seq.1} parent=107 // pred_check
          %p818 = pneg %p322
        $region114: #{rnn_classifier_forward_seq.1} parent=107 // pred_check_branch
          %820 = sbr.rel (%p818) target = $region116
        $region115: #{rnn_classifier_forward_seq.1} parent=107 // pred_region
          %s821 = sand.u32 %s37, 1
          %s822 = scalar_lea.sflag [#allocation13], %s821
          %s823 = sand.u32 %s307, 1
          %s824 = smul.addr %s823, 4
          %s825 = scalar_lea.vmem [#allocation12], %s824
          %827 = dma.done %s822, 64
        $region116: #{rnn_classifier_forward_seq.1} parent=107 // pred_fallthru
          _
      $region108: #{rnn_classifier_forward_seq.1} parent=5 // pred_fallthru
        _
    $region6: #{rnn_classifier_forward_seq.1} parent=1 // loop_footer
      %s35 = sadd.s32 1, %s31
    $region7: #{rnn_classifier_forward_seq.1} parent=1 // loop_footer_branch
      %30 = sbr.rel target = $region3
    $region8: #{rnn_classifier_forward_seq.1} parent=1 // loop_exit
      _
    %828 = vsyncpa [#allocation4], 1
    %s829 = scalar_lea.sflag [#allocation4], 1
    %830 = vsyncpa %s829, 1
    %831 = vsyncpa [#allocation7], 1
    %832 = vsyncpa [#allocation10], 1
    %833 = vsyncpa [#allocation5], 1
    %s834 = scalar_lea.sflag [#allocation5], 1
    %835 = vsyncpa %s834, 1
    %836 = vsyncpa [#allocation13], 1
    %s837 = scalar_lea.sflag [#allocation13], 1
    %838 = vsyncpa %s837, 1

</llo_original>
